<compile_context>
chip_gen: v5e
topology: v5e:2x2
jax: 0.10.0
libtpu: 0.0.40
codegen_flags: <defaults>
</compile_context>

<pallas_src>
import functools

import jax
import jax.numpy as jnp
from jax import lax
from jax.experimental import pallas as pl
from jax.experimental.pallas import tpu as pltpu


# ---------------------------------------------------------------------------
# Kernel 1: per-head input projection   x_tile @ W_h  ->  (B, H, L, D)
# ---------------------------------------------------------------------------
def _proj_kernel(x_ref, w_ref, o_ref):
    # x_ref: (tl, IN)   w_ref: (IN, D)   o_ref: (tl, D)
    o_ref[...] = jnp.dot(
        x_ref[...], w_ref[...], preferred_element_type=jnp.float32
    ).astype(o_ref.dtype)


def _project_per_head(x, w_heads, *, block_l):
    """x: (B, L, IN), w_heads: (H, IN, D)  ->  (B, H, L, D)."""
    B, L, IN = x.shape
    H, IN2, D = w_heads.shape
    assert IN2 == IN
    tl = min(block_l, L)
    assert L % tl == 0, "sequence length must be divisible by the L tile"
    n_l = L // tl
    # TODO(synk): for very large IN, add a K-tile grid axis with an accumulator
    # instead of taking the full contraction dim per block.
    return pl.pallas_call(
        _proj_kernel,
        out_shape=jax.ShapeDtypeStruct((B, H, L, D), x.dtype),
        grid_spec=pltpu.PrefetchScalarGridSpec(
            num_scalar_prefetch=0,
            grid=(B, n_l, H),  # head axis innermost -> x tile stays resident
            in_specs=[
                pl.BlockSpec((None, tl, IN), lambda b, li, h: (b, li, 0)),
                pl.BlockSpec((None, IN, D), lambda b, li, h: (h, 0, 0)),
            ],
            out_specs=pl.BlockSpec(
                (None, None, tl, D), lambda b, li, h: (b, h, li, 0)),
        ),
        compiler_params=pltpu.CompilerParams(
            dimension_semantics=("parallel", "parallel", "arbitrary"),
            vmem_limit_bytes=64 * 1024 * 1024,
        ),
    )(x, w_heads)


# ---------------------------------------------------------------------------
# Kernel 2: flash attention (online softmax) + fused output projection
# grid = (B, q-tiles, heads, kv-tiles)
# ---------------------------------------------------------------------------
def _flash_mha_kernel(q_ref, k_ref, v_ref, wo_ref, bo_ref, out_ref,
                      m_scr, l_scr, acc_scr, out_scr, *, inv_scale):
    h = pl.program_id(2)
    ki = pl.program_id(3)
    n_h = pl.num_programs(2)
    n_kv = pl.num_programs(3)

    @pl.when(ki == 0)
    def _init_head_state():
        m_scr[...] = jnp.full(m_scr.shape, -jnp.inf, dtype=m_scr.dtype)
        l_scr[...] = jnp.zeros(l_scr.shape, dtype=l_scr.dtype)
        acc_scr[...] = jnp.zeros(acc_scr.shape, dtype=acc_scr.dtype)

    @pl.when(jnp.logical_and(ki == 0, h == 0))
    def _init_out_state():
        out_scr[...] = jnp.zeros(out_scr.shape, dtype=out_scr.dtype)

    q = q_ref[...]          # (tq, D)
    k = k_ref[...]          # (tk, D)
    v = v_ref[...]          # (tk, D)

    # Scores: contract over D with a transposed-RHS dot_general (no k.T, no XLU
    # transpose); fold 1/scale in as a compile-time constant multiply.
    s = lax.dot_general(
        q, k, dimension_numbers=(((1,), (1,)), ((), ())),
        preferred_element_type=jnp.float32) * inv_scale          # (tq, tk)
    # TODO(synk): mask (masked_fill with -1e20) and attention-weight dropout are
    # no-ops in this config (mask=None, dropout=0) and are omitted.

    m_prev = m_scr[...]
    m_new = jnp.maximum(m_prev, jnp.max(s, axis=-1, keepdims=True))
    alpha = jnp.exp(m_prev - m_new)
    p = jnp.exp(s - m_new)                                       # (tq, tk)
    l_scr[...] = alpha * l_scr[...] + jnp.sum(p, axis=-1, keepdims=True)
    acc_scr[...] = alpha * acc_scr[...] + jnp.dot(
        p.astype(v.dtype), v, preferred_element_type=jnp.float32)  # (tq, D)
    m_scr[...] = m_new

    @pl.when(ki == n_kv - 1)
    def _finalize_head():
        l = l_scr[...]
        inv_l = pl.reciprocal(l, approx=True)        # EUP slot, ~free
        inv_l = inv_l * (2.0 - l * inv_l)            # one Newton step -> f32 acc.
        ctx = acc_scr[...] * inv_l                   # (tq, D)
        # Fused output projection: accumulate this head's contribution.
        out_scr[...] += jnp.dot(
            ctx.astype(wo_ref.dtype), wo_ref[...],
            preferred_element_type=jnp.float32)       # (tq, E)

    @pl.when(jnp.logical_and(ki == n_kv - 1, h == n_h - 1))
    def _write_out():
        out_ref[...] = (out_scr[...] + bo_ref[...]).astype(out_ref.dtype)


def multihead_attention(query, key, value, params, *, num_heads,
                        block_q=256, block_kv=256, block_l=256):
    """query: (B, Lq, E)  key: (B, S, Kd)  value: (B, S, Vd)  ->  (B, Lq, E).

    Tile-size notes: defaults target v6e (256-multiples feed the 256-wide MXU);
    on v7x (64 MiB VMEM) prefer ~half the v6e tile (e.g. block_kv=128/256); on
    v5e 128-multiples are sufficient.
    """
    B, Lq, E = query.shape
    Bk, S, Kd = key.shape
    Bv, Sv, Vd = value.shape
    assert B == Bk == Bv and S == Sv
    assert E % num_heads == 0
    H = num_heads
    D = E // num_heads
    inv_scale = 1.0 / (float(E) ** 0.5)   # spec module scales by sqrt(embed_dim)

    # PyTorch nn.Linear stores W as (out, in).  Arrange per-head slices so the
    # kernels only ever slice leading dims (free) — never the lane axis.
    wq_h = params["wq"].T.reshape(E, H, D).transpose(1, 0, 2)    # (H, E,  D)
    wk_h = params["wk"].T.reshape(Kd, H, D).transpose(1, 0, 2)   # (H, Kd, D)
    wv_h = params["wv"].T.reshape(Vd, H, D).transpose(1, 0, 2)   # (H, Vd, D)
    wo_h = params["wo"].T.reshape(H, D, E)                       # (H, D,  E)
    bo = params["bo"].reshape(1, E)

    # --- per-head input projections (Pallas, tiled over B / L / heads) ---
    qp = _project_per_head(query, wq_h, block_l=block_l)   # (B, H, Lq, D)
    kp = _project_per_head(key, wk_h, block_l=block_l)     # (B, H, S,  D)
    vp = _project_per_head(value, wv_h, block_l=block_l)   # (B, H, S,  D)

    tq = min(block_q, Lq)
    tk = min(block_kv, S)
    assert Lq % tq == 0 and S % tk == 0
    n_q = Lq // tq
    n_kv = S // tk

    kernel = functools.partial(_flash_mha_kernel, inv_scale=inv_scale)

    return pl.pallas_call(
        kernel,
        out_shape=jax.ShapeDtypeStruct((B, Lq, E), query.dtype),
        grid_spec=pltpu.PrefetchScalarGridSpec(
            num_scalar_prefetch=0,
            grid=(B, n_q, H, n_kv),
            in_specs=[
                pl.BlockSpec((None, None, tq, D),
                             lambda b, qi, h, ki: (b, h, qi, 0)),   # Q (resident over ki)
                pl.BlockSpec((None, None, tk, D),
                             lambda b, qi, h, ki: (b, h, ki, 0)),   # K stream
                pl.BlockSpec((None, None, tk, D),
                             lambda b, qi, h, ki: (b, h, ki, 0)),   # V stream
                pl.BlockSpec((None, D, E),
                             lambda b, qi, h, ki: (h, 0, 0)),       # Wo head slice
                pl.BlockSpec((1, E), lambda b, qi, h, ki: (0, 0)),  # bias
            ],
            # Lane-dense (tq, E) output slab, resident across the h/kv axes.
            out_specs=pl.BlockSpec((None, tq, E), lambda b, qi, h, ki: (b, qi, 0)),
            scratch_shapes=[
                pltpu.VMEM((tq, 1), jnp.float32),   # running max m
                pltpu.VMEM((tq, 1), jnp.float32),   # running denom l
                pltpu.VMEM((tq, D), jnp.float32),   # per-head context acc
                pltpu.VMEM((tq, E), jnp.float32),   # output-projection acc
            ],
        ),
        compiler_params=pltpu.CompilerParams(
            dimension_semantics=("parallel", "parallel", "arbitrary", "arbitrary"),
            vmem_limit_bytes=64 * 1024 * 1024,
        ),
    )(qp, kp, vp, wo_h, bo)


def multihead_attention_ref(query, key, value, params, *, num_heads):
    """Pure-JAX reference mirroring the PyTorch module exactly."""
    B, Lq, E = query.shape
    _, S, _ = key.shape
    D = E // num_heads
    scale = float(E) ** 0.5
    q = (query @ params["wq"].T).reshape(B, Lq, num_heads, D)
    k = (key @ params["wk"].T).reshape(B, S, num_heads, D)
    v = (value @ params["wv"].T).reshape(B, S, num_heads, D)
    attn = jnp.einsum("bqhd,blhd->bhql", q, k)
    attn = jax.nn.softmax(attn / scale, axis=3)
    out = jnp.einsum("bhql,blhd->bqhd", attn, v).reshape(B, Lq, E)
    return out @ params["wo"].T + params["bo"]


if __name__ == "__main__":
    # Small deterministic config.
    B, Lq, S = 2, 8, 8
    embed_dim, num_heads = 32, 4
    kdim, vdim = embed_dim, embed_dim

    key0 = jax.random.PRNGKey(0)
    ks = jax.random.split(key0, 8)

    def uniform_init(k, shape, fan_in):
        bound = 1.0 / (fan_in ** 0.5)
        return jax.random.uniform(k, shape, jnp.float32, -bound, bound)

    # Parameters (shapes as in nn.Linear: weight (out, in), bias (out,)).
    params = {
        "wq": uniform_init(ks[0], (embed_dim, embed_dim), embed_dim),
        "wk": uniform_init(ks[1], (embed_dim, kdim), kdim),
        "wv": uniform_init(ks[2], (embed_dim, vdim), vdim),
        "wo": uniform_init(ks[3], (embed_dim, embed_dim), embed_dim),
        "bo": uniform_init(ks[4], (embed_dim,), embed_dim),
    }

    query = jax.random.normal(ks[5], (B, Lq, embed_dim), jnp.float32)
    key_ = jax.random.normal(ks[6], (B, S, kdim), jnp.float32)
    value = jax.random.normal(ks[7], (B, S, vdim), jnp.float32)

    out = multihead_attention(query, key_, value, params, num_heads=num_heads)
    out = jax.block_until_ready(out)

    ref = multihead_attention_ref(query, key_, value, params, num_heads=num_heads)
    assert out.shape == (B, Lq, embed_dim)
    assert jnp.allclose(out, ref, atol=2e-4, rtol=2e-4), "mismatch vs JAX reference"

    print("KERNEL_OK")
</pallas_src>

<mosaic_0001>
module attributes {stable_mosaic.version = 11 : i64} {
  func.func @_proj_kernel(%arg0: i32, %arg1: i32, %arg2: i32, %arg3: memref<1x8x32xf32, #tpu.memory_space<vmem>>, %arg4: memref<1x32x8xf32, #tpu.memory_space<vmem>>, %arg5: memref<1x1x8x8xf32, #tpu.memory_space<vmem>>) attributes {dimension_semantics = [#tpu.dimension_semantics<parallel>, #tpu.dimension_semantics<parallel>, #tpu.dimension_semantics<arbitrary>], iteration_bounds = array<i64: 2, 1, 4>, scalar_prefetch = 0 : i64, scratch_operands = 0 : i64, tpu.core_type = #tpu.core_type<tc>, window_params = [{transform_indices = @transform_0, window_bounds = array<i64: 1, 8, 32>}, {transform_indices = @transform_1, window_bounds = array<i64: 1, 32, 8>}, {transform_indices = @transform_2, window_bounds = array<i64: 1, 1, 8, 8>}]} {
    %c0 = arith.constant 0 : index
    %c0_0 = arith.constant 0 : index
    %c0_1 = arith.constant 0 : index
    %0 = vector.load %arg3[%c0, %c0_0, %c0_1] : memref<1x8x32xf32, #tpu.memory_space<vmem>>, vector<1x8x32xf32>
    %1 = vector.shape_cast %0 : vector<1x8x32xf32> to vector<8x32xf32>
    %c0_2 = arith.constant 0 : index
    %c0_3 = arith.constant 0 : index
    %c0_4 = arith.constant 0 : index
    %2 = vector.load %arg4[%c0_2, %c0_3, %c0_4] : memref<1x32x8xf32, #tpu.memory_space<vmem>>, vector<1x32x8xf32>
    %3 = vector.shape_cast %2 : vector<1x32x8xf32> to vector<32x8xf32>
    %cst = arith.constant dense<0.000000e+00> : vector<8x8xf32>
    %4 = tpu.matmul %1, %3, %cst {dimension_numbers = #tpu.dot_dimension_numbers<[1], [0], [0], [1], [0, 0, 1, 1], [], []>} : vector<8x32xf32>, vector<32x8xf32>, vector<8x8xf32> -> vector<8x8xf32>
    %c0_5 = arith.constant 0 : index
    %c0_6 = arith.constant 0 : index
    %c0_7 = arith.constant 0 : index
    %c0_8 = arith.constant 0 : index
    %5 = vector.load %arg5[%c0_5, %c0_6, %c0_7, %c0_8] : memref<1x1x8x8xf32, #tpu.memory_space<vmem>>, vector<1x1x8x8xf32>
    %6 = vector.shape_cast %5 : vector<1x1x8x8xf32> to vector<8x8xf32>
    %7 = vector.shape_cast %4 : vector<8x8xf32> to vector<1x1x8x8xf32>
    tpu.vector_store %arg5[%c0_5, %c0_6, %c0_7, %c0_8], %7 {strides = array<i32>} : memref<1x1x8x8xf32, #tpu.memory_space<vmem>>, vector<1x1x8x8xf32>,
    return
  }
  func.func @transform_0(%arg0: i32, %arg1: i32, %arg2: i32) -> (i32, i32, i32) {
    %c0_i32 = arith.constant 0 : i32
    %c0_i32_0 = arith.constant 0 : i32
    return %arg0, %arg1, %c0_i32 : i32, i32, i32
  }
  func.func @transform_1(%arg0: i32, %arg1: i32, %arg2: i32) -> (i32, i32, i32) {
    %c0_i32 = arith.constant 0 : i32
    %c0_i32_0 = arith.constant 0 : i32
    %c0_i32_1 = arith.constant 0 : i32
    return %arg2, %c0_i32, %c0_i32_0 : i32, i32, i32
  }
  func.func @transform_2(%arg0: i32, %arg1: i32, %arg2: i32) -> (i32, i32, i32, i32) {
    %c0_i32 = arith.constant 0 : i32
    %c0_i32_0 = arith.constant 0 : i32
    return %arg0, %arg2, %arg1, %c0_i32 : i32, i32, i32, i32
  }
}

</mosaic_0001>

<llo_original>
// kernel: tpu_custom_call.1
$region0: #{tpu_custom_call.1}
  #allocation0 [shape = 'u32[]', space=smem, size = 0x4, offset = 0x4, fixed_abs, tag = 'smem constant byte address 0x4 - core index']
  #allocation1 [shape = 'u32[72,128]{1,0:T(1,128)}', space=vmem, size = 0x9000, scoped, tag = 'internal scratch']
  %s0 = inlined_call_operand.vmem [shape: f32[2,8,32], index: 0, kind: input, shape index: {}]
  %s1 = inlined_call_operand.vmem [shape: f32[4,32,8], index: 1, kind: input, shape index: {}]
  %s2 = inlined_call_operand.hbm [shape: f32[2,4,8,8], index: 2, kind: output, shape index: {}]
  %s3 = sld [smem:[#allocation0]]
  $region41: #{tpu_custom_call.1} parent=0
    _
  %s5 = ssub.s32 1, %s3
  %s6 = scalar_select 0, %s5, %s3
  $region1: #{tpu_custom_call.1} parent=0
    #allocation2 [shape = 'u8[8192]{0}', space=vmem, size = 0x2000, scoped, tag = 'output window, operand 0']
    #allocation3 [shape = 's32[2]{0}', space=sflag, size = 0x8, scoped, tag = 'scoped memory for tpu_custom_call.1']
    %7 = vsyncpa [#allocation3], 0
    %s8 = scalar_lea.sflag [#allocation3], 1
    %9 = vsyncpa %s8, 0
    loop: start=0, step=1, limit=10
    $region2: #{tpu_custom_call.1} parent=1 // loop_pre_header
      _
    $region3: #{tpu_custom_call.1} parent=1 // loop_header
      %s11 = sphi 0, %s15
      %p12 = scmp.ge.s32.totalorder %s11, 10
      %s18 = sphi 0, %s37
      %s19 = sphi 0, %s33
      %s20 = sphi 0, %s29
      %s21 = sphi 0, %s18
      %s22 = sphi 0, %s19
      %s23 = sphi 0, %s20
      %s24 = sphi 0, %s21
      %s25 = sphi 0, %s22
      %s26 = sphi 0, %s23
      %s42 = sphi 0, %s44
      %s45 = sphi 0, %s42
      %s46 = sphi 0, %s45
      %s62 = sphi 0, %s46
      %s68 = sphi 0, %s70
      %s71 = sphi 0, %s68
      %s72 = sphi 0, %s71
      %s88 = sphi 0, %s72
      %s98 = sphi 0, %s100
      %s101 = sphi 0, %s98
      %s102 = sphi 0, %s101
      %s118 = sphi 0, %s102
    $region4: #{tpu_custom_call.1} parent=1 // loop_header_branch
      %14 = sbr.rel (%p12) target = $region8
    $region5: #{tpu_custom_call.1} parent=1 // loop_body
      %s16 = ssub.s32 %s11, 1
      %s17 = ssub.s32 %s11, 2
      %s27 = sadd.s32 1, %s20
      %p28 = scmp.ge.s32.totalorder %s27, 4
      %s29 = scalar_select %p28, 0, %s27
      %s30 = sadd.s32 1, %s19
      %s31 = scalar_select %p28, %s30, %s19
      %p32 = scmp.ge.s32.totalorder %s31, 1
      %s33 = scalar_select %p32, 0, %s31
      %s34 = sadd.s32 1, %s18
      %s35 = scalar_select %p32, %s34, %s18
      %p36 = scmp.ge.s32.totalorder %s35, 2
      %s37 = scalar_select %p36, 0, %s35
      %s38 = ssub.s32 %s18, %s37
      %s39 = ssub.s32 %s19, %s33
      %s40 = sor.u32 %s38, %s39
      %p41 = scmp.eq.s32.totalorder %s40, 0
      %s43 = sadd.s32 %s42, 1
      %s44 = scalar_select %p41, %s42, %s43
      %p47 = pneg %p41
      %p48 = scmp.eq.s32.totalorder %s11, 7
      %p49 = por %p47, %p48
      %p50 = scmp.ne.s32.totalorder %s42, %s45
      %p51 = scmp.eq.s32.totalorder %s11, 0
      %p52 = por %p50, %p51
      %p53 = scmp.ne.s32.totalorder %s42, %s45
      %p54 = scmp.eq.s32.totalorder %s16, 7
      %p55 = por %p53, %p54
      %p56 = scmp.ne.s32.totalorder %s45, %s46
      %p57 = scmp.eq.s32.totalorder %s16, 0
      %p58 = por %p56, %p57
      %p59 = scmp.ne.s32.totalorder %s45, %s46
      %p60 = scmp.eq.s32.totalorder %s17, 7
      %p61 = por %p59, %p60
      %p63 = scmp.ne.s32.totalorder %s46, %s62
      %p64 = scmp.eq.s32.totalorder %s17, 0
      %p65 = por %p63, %p64
      %s66 = ssub.s32 %s20, %s29
      %p67 = scmp.eq.s32.totalorder %s66, 0
      %s69 = sadd.s32 %s68, 1
      %s70 = scalar_select %p67, %s68, %s69
      %p73 = pneg %p67
      %p74 = scmp.eq.s32.totalorder %s11, 7
      %p75 = por %p73, %p74
      %p76 = scmp.ne.s32.totalorder %s68, %s71
      %p77 = scmp.eq.s32.totalorder %s11, 0
      %p78 = por %p76, %p77
      %p79 = scmp.ne.s32.totalorder %s68, %s71
      %p80 = scmp.eq.s32.totalorder %s16, 7
      %p81 = por %p79, %p80
      %p82 = scmp.ne.s32.totalorder %s71, %s72
      %p83 = scmp.eq.s32.totalorder %s16, 0
      %p84 = por %p82, %p83
      %p85 = scmp.ne.s32.totalorder %s71, %s72
      %p86 = scmp.eq.s32.totalorder %s17, 7
      %p87 = por %p85, %p86
      %p89 = scmp.ne.s32.totalorder %s72, %s88
      %p90 = scmp.eq.s32.totalorder %s17, 0
      %p91 = por %p89, %p90
      %s92 = ssub.s32 %s18, %s37
      %s93 = ssub.s32 %s20, %s29
      %s94 = sor.u32 %s92, %s93
      %s95 = ssub.s32 %s19, %s33
      %s96 = sor.u32 %s94, %s95
      %p97 = scmp.eq.s32.totalorder %s96, 0
      %s99 = sadd.s32 %s98, 1
      %s100 = scalar_select %p97, %s98, %s99
      %p103 = pneg %p97
      %p104 = scmp.eq.s32.totalorder %s11, 7
      %p105 = por %p103, %p104
      %p106 = scmp.ne.s32.totalorder %s98, %s101
      %p107 = scmp.eq.s32.totalorder %s11, 0
      %p108 = por %p106, %p107
      %p109 = scmp.ne.s32.totalorder %s98, %s101
      %p110 = scmp.eq.s32.totalorder %s16, 7
      %p111 = por %p109, %p110
      %p112 = scmp.ne.s32.totalorder %s101, %s102
      %p113 = scmp.eq.s32.totalorder %s16, 0
      %p114 = por %p112, %p113
      %p115 = scmp.ne.s32.totalorder %s101, %s102
      %p116 = scmp.eq.s32.totalorder %s17, 7
      %p117 = por %p115, %p116
      %p119 = scmp.ne.s32.totalorder %s102, %s118
      %p120 = scmp.eq.s32.totalorder %s17, 0
      %p121 = por %p119, %p120
      %p122 = scmp.le.s32.totalorder 1, %s11
      %p123 = scmp.lt.s32.totalorder %s11, 9
      %p124 = pnand %p122, %p123
      %p125 = pneg %p124
      // Predicated region
      $region9: #{tpu_custom_call.1} parent=5 // pred_check
        _
      $region10: #{tpu_custom_call.1} parent=5 // pred_check_branch
        %127 = sbr.rel (%p124) target = $region12
      $region11: #{tpu_custom_call.1} parent=5 // pred_region
        %s128 = ssub.s32 %s11, 1
      $region12: #{tpu_custom_call.1} parent=5 // pred_fallthru
        _
      %p129 = scmp.lt.s32.totalorder %s11, 8
      // Predicated region
      $region13: #{tpu_custom_call.1} parent=5 // pred_check
        %p130 = pneg %p129
      $region14: #{tpu_custom_call.1} parent=5 // pred_check_branch
        %132 = sbr.rel (%p130) target = $region16
      $region15: #{tpu_custom_call.1} parent=5 // pred_region
        // Predicated region
        $region17: #{tpu_custom_call.1} parent=15 // pred_check
          %p133 = pneg %p52
        $region18: #{tpu_custom_call.1} parent=15 // pred_check_branch
          %135 = sbr.rel (%p133) target = $region20
        $region19: #{tpu_custom_call.1} parent=15 // pred_region
          %p136 = scmp.lt.s32.totalorder %s18, 1
          %s137 = scalar_select %p136, %s18, 1
          %p138 = scmp.lt.s32.totalorder %s19, 0
          %s139 = scalar_select %p138, %s19, 0
          %s140 = sadd.s32 %s139, %s137
          %s141 = smul.addr %s140, 8
          %s142 = scalar_lea.vmem %s0, %s141
        $region20: #{tpu_custom_call.1} parent=15 // pred_fallthru
          _
        // Predicated region
        $region21: #{tpu_custom_call.1} parent=15 // pred_check
          %p143 = pneg %p78
        $region22: #{tpu_custom_call.1} parent=15 // pred_check_branch
          %145 = sbr.rel (%p143) target = $region24
        $region23: #{tpu_custom_call.1} parent=15 // pred_region
          %p146 = scmp.lt.s32.totalorder %s20, 3
          %s147 = scalar_select %p146, %s20, 3
          %s148 = smul.addr %s147, 4
          %s149 = smul.addr %s148, 8
          %s150 = scalar_lea.vmem %s1, %s149
        $region24: #{tpu_custom_call.1} parent=15 // pred_fallthru
          _
      $region16: #{tpu_custom_call.1} parent=5 // pred_fallthru
        _
      %p151 = scmp.le.s32.totalorder 1, %s11
      %p152 = scmp.lt.s32.totalorder %s11, 9
      %p153 = pnand %p151, %p152
      %p154 = pneg %p153
      // Predicated region
      $region25: #{tpu_custom_call.1} parent=5 // pred_check
        _
      $region26: #{tpu_custom_call.1} parent=5 // pred_check_branch
        %156 = sbr.rel (%p153) target = $region28
      $region27: #{tpu_custom_call.1} parent=5 // pred_region
        %s157 = ssub.s32 %s11, 1
        %p158 = scmp.lt.s32.totalorder %s21, 1
        %s159 = scalar_select %p158, %s21, 1
        %p160 = scmp.lt.s32.totalorder %s22, 0
        %s161 = scalar_select %p160, %s22, 0
        %s162 = sadd.s32 %s161, %s159
        %s163 = smul.addr %s162, 8
        %s164 = scalar_lea.vmem %s0, %s163
        %p165 = pneg %p58
        %p166 = pneg %p55
        %p167 = scmp.lt.s32.totalorder %s23, 3
        %s168 = scalar_select %p167, %s23, 3
        %s169 = smul.addr %s168, 4
        %s170 = smul.addr %s169, 8
        %s171 = scalar_lea.vmem %s1, %s170
        %p172 = pneg %p84
        %p173 = pneg %p81
        %p174 = pneg %p114
        %p175 = pneg %p111
        %s176 = sand.u32 %s101, 1
        %s177 = scalar_lea.sflag [#allocation3], %s176
        %s178 = sand.u32 %s101, 1
        %s179 = smul.addr %s178, 8
        %s180 = scalar_lea.vmem [#allocation2], %s179
        %p181 = scmp.lt.s32.totalorder %s21, 1
        %s182 = scalar_select %p181, %s21, 1
        %p183 = scmp.lt.s32.totalorder %s22, 0
        %s184 = scalar_select %p183, %s22, 0
        %s185 = sadd.s32 %s184, %s182
        %s186 = smul.addr %s185, 8
        %s187 = scalar_lea.vmem %s0, %s186
        %p188 = scmp.lt.s32.totalorder %s23, 3
        %s189 = scalar_select %p188, %s23, 3
        %s190 = smul.addr %s189, 4
        %s191 = smul.addr %s190, 8
        %s192 = scalar_lea.vmem %s1, %s191
        %v193 = vld [vmem:[%s187] sm:$0xff]
        %v194 = vld [vmem:[%s192] sm:$0xff]
        %v195 = vld [vmem:[%s192 + $0x8] sm:$0xff]
        %v196 = vld [vmem:[%s192 + $0x10] sm:$0xff]
        %v197 = vld [vmem:[%s192 + $0x18] sm:$0xff]
        %vm198 = vcmask 261120
        %v200 = vsel %vm198, %v193, 0
        %202 = vmatpush.msra.mxu0 0.0
        %203 = vmatpush.msra.mxu0 0.0
        %204 = vmatpush.msra.mxu0 0.0
        %205 = vmatpush.msra.mxu0 0.0
        %206 = vmatpush.msra.mxu0 0.0
        %207 = vmatpush.msra.mxu0 0.0
        %208 = vmatpush.msra.mxu0 0.0
        %209 = vmatpush.msra.mxu0 0.0
        %210 = vmatpush.msra.mxu0 0.0
        %211 = vmatpush.msra.mxu0 0.0
        %212 = vmatpush.msra.mxu0 0.0
        %213 = vmatpush.msra.mxu0 0.0
        %214 = vmatpush.msra.mxu0 %v197
        %215 = vmatpush.msra.mxu0 %v196
        %216 = vmatpush.msra.mxu0 %v195
        %217 = vmatpush.msra.mxu0 %v194
        %218 = vmatmul.f32.gmra.mxu0 %v200
        %v219 = vpop.f32.mrf.mxu0
        %v220 = vadd.f32 0.0, %v219
        %221 = vdwg.mxu0
        %vm222 = vcmask 64512
        %223 = vst.msk [vmem:[%s180] sm:$0xff] %vm222, %v220
        %s224 = sand.u32 %s101, 1
        %s225 = scalar_lea.sflag [#allocation3], %s224
        %s226 = sand.u32 %s101, 1
        %s227 = smul.addr %s226, 8
        %s228 = scalar_lea.vmem [#allocation2], %s227
        // Predicated region
        $region29: #{tpu_custom_call.1} parent=27 // pred_check
          %p229 = pneg %p111
        $region30: #{tpu_custom_call.1} parent=27 // pred_check_branch
          %231 = sbr.rel (%p229) target = $region32
        $region31: #{tpu_custom_call.1} parent=27 // pred_region
          %233 = vsyncadd %s225, 0
          %s234 = sadd.s32 %s22, %s23
          %s235 = smul.addr %s21, 4
          %s236 = sadd.s32 %s234, %s235
          %s237 = smul.addr %s236, 8
          %s238 = scalar_lea.hbm %s2, %s237
          %s240 = sshll.u32 %s228, 4
          %s241 = int_to_ptr.vmem [resolvable:$true] %s240
          %s242 = sshll.u32 %s238, 4
          %s243 = int_to_ptr.hbm [resolvable:$true] %s242
          %245 = dma.vmem_to_hbm [thread:$0]  %s241, 128, %s243, %s225
        $region32: #{tpu_custom_call.1} parent=27 // pred_fallthru
          _
      $region28: #{tpu_custom_call.1} parent=5 // pred_fallthru
        _
      %p246 = scmp.le.s32.totalorder 2, %s11
      // Predicated region
      $region33: #{tpu_custom_call.1} parent=5 // pred_check
        %p247 = pneg %p246
      $region34: #{tpu_custom_call.1} parent=5 // pred_check_branch
        %249 = sbr.rel (%p247) target = $region36
      $region35: #{tpu_custom_call.1} parent=5 // pred_region
        %s250 = ssub.s32 %s11, 2
        // Predicated region
        $region37: #{tpu_custom_call.1} parent=35 // pred_check
          %p251 = pneg %p117
        $region38: #{tpu_custom_call.1} parent=35 // pred_check_branch
          %253 = sbr.rel (%p251) target = $region40
        $region39: #{tpu_custom_call.1} parent=35 // pred_region
          %s254 = sand.u32 %s102, 1
          %s255 = scalar_lea.sflag [#allocation3], %s254
          %s256 = sand.u32 %s102, 1
          %s257 = smul.addr %s256, 8
          %s258 = scalar_lea.vmem [#allocation2], %s257
          %260 = dma.done %s255, 128
        $region40: #{tpu_custom_call.1} parent=35 // pred_fallthru
          _
      $region36: #{tpu_custom_call.1} parent=5 // pred_fallthru
        _
    $region6: #{tpu_custom_call.1} parent=1 // loop_footer
      %s15 = sadd.s32 1, %s11
    $region7: #{tpu_custom_call.1} parent=1 // loop_footer_branch
      %10 = sbr.rel target = $region3
    $region8: #{tpu_custom_call.1} parent=1 // loop_exit
      _
    %261 = vsyncpa [#allocation3], 1
    %s262 = scalar_lea.sflag [#allocation3], 1
    %263 = vsyncpa %s262, 1

</llo_original>
